<compile_context>
chip_gen: v7x
topology: tpu7x:2x2x1
jax: 0.10.0
libtpu: 0.0.40
codegen_flags: <defaults>
</compile_context>

<pallas_src>
import functools

import jax
import jax.numpy as jnp
from jax.experimental import pallas as pl
from jax.experimental.pallas import tpu as pltpu


def _sent_label_encoder_kernel(x_ref, wconv_ref, wsem_ref, bsem_ref, out_ref, *, L, W):
    # x_ref:    (B_blk, L + 2*(W//2), C_in)  zero-padded input rows (one batch block)
    # wconv_ref:(W*C_in, C_out)              fused conv taps (im2col weight layout)
    # wsem_ref: (C_out, Sem_pad)             first_semlayer weight (transposed, padded)
    # bsem_ref: (1, Sem_pad)                 first_semlayer bias (f32, padded)
    # out_ref:  (B_blk, Sem_pad)
    b_blk = x_ref.shape[0]
    c_in = x_ref.shape[-1]
    c_out = wconv_ref.shape[-1]

    # im2col: concatenate the W shifted sequence views along the channel (lane)
    # axis so the whole Conv1d is a single (B_blk*L, W*C_in) @ (W*C_in, C_out) dot.
    cols = jnp.concatenate([x_ref[:, k:k + L, :] for k in range(W)], axis=-1)
    cols = cols.reshape(b_blk * L, W * c_in)
    conv = jnp.dot(cols, wconv_ref[...], preferred_element_type=jnp.float32)
    conv = conv.reshape(b_blk, L, c_out)

    # Max-pool over the sequence axis (torch.max(x, -1)[0]); dropout = identity (eval).
    pooled = jnp.max(conv, axis=1)                               # (B_blk, C_out) f32

    # first_semlayer + tanh (sibling.activation='tanh').
    h = jnp.dot(pooled.astype(wsem_ref.dtype), wsem_ref[...],
                preferred_element_type=jnp.float32)
    h = jnp.tanh(h + bsem_ref[...])
    out_ref[...] = h.astype(out_ref.dtype)


def sent_label_encoder(x_ncl, w_conv, w_sem, b_sem, *, conv_width,
                       compute_dtype=jnp.bfloat16, batch_block=512):
    """x_ncl: (B, C_in, L) like PyTorch Conv1d input. Returns (B, sem_size) f32."""
    B, C_in, L = x_ncl.shape
    W = conv_width
    assert W % 2 == 1, "padding=W//2 matches PyTorch output length only for odd conv.width"
    pad = W // 2
    C_out = w_conv.shape[0]
    Sem = w_sem.shape[0]
    Sem_pad = ((Sem + 127) // 128) * 128      # lane-dense output block

    # Batch block: keep tiny batches in one step; for large batches use ~half of B
    # (so a v7x chip gets one fat step per TensorCore), 8-aligned, capped so the
    # double-buffered input block stays well inside VMEM on every generation.
    if B <= 16:
        B_blk = B
    else:
        half = -(-((B + 1) // 2) // 8) * 8    # ceil(B/2) rounded up to a multiple of 8
        B_blk = min(batch_block, half)
    grid = (pl.cdiv(B, B_blk),)

    # NCL -> NLC (channels on lanes) + zero-pad the sequence axis; under jit the
    # transpose/pad/cast fuse into a single producer for the kernel input.
    x_nlc = jnp.transpose(x_ncl, (0, 2, 1)).astype(compute_dtype)   # (B, L, C_in)
    x_pad = jnp.pad(x_nlc, ((0, 0), (pad, pad), (0, 0)))            # (B, Lp, C_in)
    Lp = L + 2 * pad

    # Conv weight (C_out, C_in, W) -> fused im2col weight (W*C_in, C_out):
    # row k*C_in + c corresponds to tap k, input channel c (matches cols order).
    w_fused = jnp.transpose(w_conv, (2, 1, 0)).reshape(W * C_in, C_out)
    w_fused = w_fused.astype(compute_dtype)
    # Linear weight (Sem, C_out) -> (C_out, Sem_pad); bias -> (1, Sem_pad), kept f32.
    w_sem_t = jnp.pad(jnp.transpose(w_sem, (1, 0)), ((0, 0), (0, Sem_pad - Sem)))
    w_sem_t = w_sem_t.astype(compute_dtype)
    b_sem_p = jnp.pad(b_sem.astype(jnp.float32), (0, Sem_pad - Sem)).reshape(1, Sem_pad)

    kernel = functools.partial(_sent_label_encoder_kernel, L=L, W=W)

    out = pl.pallas_call(
        kernel,
        out_shape=jax.ShapeDtypeStruct((B, Sem_pad), jnp.float32),
        grid_spec=pl.GridSpec(
            grid=grid,
            in_specs=[
                pl.BlockSpec((B_blk, Lp, C_in), lambda b: (b, 0, 0)),
                pl.BlockSpec((W * C_in, C_out), lambda b: (0, 0)),
                pl.BlockSpec((C_out, Sem_pad), lambda b: (0, 0)),
                pl.BlockSpec((1, Sem_pad), lambda b: (0, 0)),
            ],
            out_specs=pl.BlockSpec((B_blk, Sem_pad), lambda b: (b, 0)),
        ),
        compiler_params=pltpu.CompilerParams(
            dimension_semantics=("parallel",)),
    )(x_pad, w_fused, w_sem_t, b_sem_p)

    return out[:, :Sem]


def reference_jax(x_ncl, w_conv, w_sem, b_sem, *, conv_width):
    """Plain-JAX reference mirroring the PyTorch forward (eval mode)."""
    pad = conv_width // 2
    out = jax.lax.conv_general_dilated(
        x_ncl, w_conv, window_strides=(1,), padding=[(pad, pad)],
        dimension_numbers=("NCH", "OIH", "NCH"))
    pooled = jnp.max(out, axis=-1)                               # (B, C_out)
    return jnp.tanh(pooled @ w_sem.T + b_sem)                    # (B, Sem)


if __name__ == "__main__":
    # Small, module-consistent shapes.
    B = 2          # batch
    C_in = 16      # p['input.dim']
    L = 16         # sequence length
    CONV = 32      # p['conv.size']
    WIDTH = 3      # p['conv.width']
    SEM = 32       # p['sem.layer.size']

    key = jax.random.PRNGKey(0)
    kx, kc, kw, kb = jax.random.split(key, 4)
    x = jax.random.normal(kx, (B, C_in, L), dtype=jnp.float32)
    w_conv = 0.1 * jax.random.normal(kc, (CONV, C_in, WIDTH), dtype=jnp.float32)
    w_sem = 0.1 * jax.random.normal(kw, (SEM, CONV), dtype=jnp.float32)
    b_sem = 0.1 * jax.random.normal(kb, (SEM,), dtype=jnp.float32)

    ref = reference_jax(x, w_conv, w_sem, b_sem, conv_width=WIDTH)

    # f32 compute path: strict check against the plain-JAX reference.
    run_f32 = jax.jit(functools.partial(sent_label_encoder, conv_width=WIDTH,
                                        compute_dtype=jnp.float32))
    out_f32 = jax.block_until_ready(run_f32(x, w_conv, w_sem, b_sem))
    assert out_f32.shape == (B, SEM)
    assert jnp.allclose(out_f32, ref, atol=1e-4, rtol=1e-4), "f32 mismatch vs reference"

    # Default bf16 matmul operands (f32 accumulation): loose check.
    run_bf16 = jax.jit(functools.partial(sent_label_encoder, conv_width=WIDTH,
                                         compute_dtype=jnp.bfloat16))
    out_bf16 = jax.block_until_ready(run_bf16(x, w_conv, w_sem, b_sem))
    assert out_bf16.shape == (B, SEM)
    assert jnp.allclose(out_bf16, ref, atol=2e-2, rtol=2e-2), "bf16 mismatch vs reference"

    print("KERNEL_OK")
</pallas_src>

<mosaic_0001>
module attributes {stable_mosaic.version = 11 : i64} {
  func.func @_sent_label_encoder_kernel(%arg0: i32, %arg1: memref<2x18x16xf32, #tpu.memory_space<vmem>>, %arg2: memref<48x32xf32, #tpu.memory_space<vmem>>, %arg3: memref<32x128xf32, #tpu.memory_space<vmem>>, %arg4: memref<1x128xf32, #tpu.memory_space<vmem>>, %arg5: memref<2x128xf32, #tpu.memory_space<vmem>>) attributes {dimension_semantics = [#tpu.dimension_semantics<parallel>], iteration_bounds = array<i64: 1>, scalar_prefetch = 0 : i64, scratch_operands = 0 : i64, tpu.core_type = #tpu.core_type<tc>, window_params = [{transform_indices = @transform_0, window_bounds = array<i64: 2, 18, 16>}, {pipeline_mode = #tpu.pipeline_mode<synchronous>, transform_indices = @transform_1, window_bounds = array<i64: 48, 32>}, {pipeline_mode = #tpu.pipeline_mode<synchronous>, transform_indices = @transform_2, window_bounds = array<i64: 32, 128>}, {pipeline_mode = #tpu.pipeline_mode<synchronous>, transform_indices = @transform_3, window_bounds = array<i64: 1, 128>}, {transform_indices = @transform_4, window_bounds = array<i64: 2, 128>}]} {
    %c0 = arith.constant 0 : index
    %c0_0 = arith.constant 0 : index
    %c0_1 = arith.constant 0 : index
    %0 = vector.load %arg1[%c0, %c0_0, %c0_1] : memref<2x18x16xf32, #tpu.memory_space<vmem>>, vector<2x16x16xf32>
    %c0_2 = arith.constant 0 : index
    %c1 = arith.constant 1 : index
    %c0_3 = arith.constant 0 : index
    %1 = vector.load %arg1[%c0_2, %c1, %c0_3] : memref<2x18x16xf32, #tpu.memory_space<vmem>>, vector<2x16x16xf32>
    %c0_4 = arith.constant 0 : index
    %c2 = arith.constant 2 : index
    %c0_5 = arith.constant 0 : index
    %2 = vector.load %arg1[%c0_4, %c2, %c0_5] : memref<2x18x16xf32, #tpu.memory_space<vmem>>, vector<2x16x16xf32>
    %3 = tpu.concatenate %0, %1, %2 in 2 : vector<2x16x16xf32>, vector<2x16x16xf32>, vector<2x16x16xf32> -> vector<2x16x48xf32>
    %4 = vector.shape_cast %3 : vector<2x16x48xf32> to vector<32x48xf32>
    %c0_6 = arith.constant 0 : index
    %c0_7 = arith.constant 0 : index
    %5 = vector.load %arg2[%c0_6, %c0_7] : memref<48x32xf32, #tpu.memory_space<vmem>>, vector<48x32xf32>
    %cst = arith.constant dense<0.000000e+00> : vector<32x32xf32>
    %6 = tpu.matmul %4, %5, %cst {dimension_numbers = #tpu.dot_dimension_numbers<[1], [0], [0], [1], [0, 0, 1, 1], [], []>} : vector<32x48xf32>, vector<48x32xf32>, vector<32x32xf32> -> vector<32x32xf32>
    %7 = vector.shape_cast %6 : vector<32x32xf32> to vector<2x16x32xf32>
    %cst_8 = arith.constant dense<0xFF800000> : vector<2x32xf32>
    %8 = vector.multi_reduction <maximumf>, %7, %cst_8 [1] : vector<2x16x32xf32> to vector<2x32xf32>
    %c0_9 = arith.constant 0 : index
    %c0_10 = arith.constant 0 : index
    %9 = vector.load %arg3[%c0_9, %c0_10] : memref<32x128xf32, #tpu.memory_space<vmem>>, vector<32x128xf32>
    %cst_11 = arith.constant dense<0.000000e+00> : vector<2x128xf32>
    %10 = tpu.matmul %8, %9, %cst_11 {dimension_numbers = #tpu.dot_dimension_numbers<[1], [0], [0], [1], [0, 0, 1, 1], [], []>} : vector<2x32xf32>, vector<32x128xf32>, vector<2x128xf32> -> vector<2x128xf32>
    %c0_12 = arith.constant 0 : index
    %c0_13 = arith.constant 0 : index
    %11 = vector.load %arg4[%c0_12, %c0_13] : memref<1x128xf32, #tpu.memory_space<vmem>>, vector<1x128xf32>
    %12 = vector.broadcast %11 : vector<1x128xf32> to vector<2x128xf32>
    %13 = arith.addf %10, %12 : vector<2x128xf32>
    %14 = math.tanh %13 : vector<2x128xf32>
    %c0_14 = arith.constant 0 : index
    %c0_15 = arith.constant 0 : index
    %15 = vector.load %arg5[%c0_14, %c0_15] : memref<2x128xf32, #tpu.memory_space<vmem>>, vector<2x128xf32>
    tpu.vector_store %arg5[%c0_14, %c0_15], %14 {strides = array<i32>} : memref<2x128xf32, #tpu.memory_space<vmem>>, vector<2x128xf32>,
    return
  }
  func.func @transform_0(%arg0: i32) -> (i32, i32, i32) {
    %c0_i32 = arith.constant 0 : i32
    %c0_i32_0 = arith.constant 0 : i32
    %c0_i32_1 = arith.constant 0 : i32
    return %arg0, %c0_i32, %c0_i32_0 : i32, i32, i32
  }
  func.func @transform_1(%arg0: i32) -> (i32, i32) {
    %c0_i32 = arith.constant 0 : i32
    %c0_i32_0 = arith.constant 0 : i32
    %c0_i32_1 = arith.constant 0 : i32
    return %c0_i32, %c0_i32_0 : i32, i32
  }
  func.func @transform_2(%arg0: i32) -> (i32, i32) {
    %c0_i32 = arith.constant 0 : i32
    %c0_i32_0 = arith.constant 0 : i32
    %c0_i32_1 = arith.constant 0 : i32
    return %c0_i32, %c0_i32_0 : i32, i32
  }
  func.func @transform_3(%arg0: i32) -> (i32, i32) {
    %c0_i32 = arith.constant 0 : i32
    %c0_i32_0 = arith.constant 0 : i32
    %c0_i32_1 = arith.constant 0 : i32
    return %c0_i32, %c0_i32_0 : i32, i32
  }
  func.func @transform_4(%arg0: i32) -> (i32, i32) {
    %c0_i32 = arith.constant 0 : i32
    %c0_i32_0 = arith.constant 0 : i32
    return %arg0, %c0_i32 : i32, i32
  }
}

</mosaic_0001>

<llo_original>
// kernel: sent_label_encoder.1
$region0: #{sent_label_encoder.1}
  #allocation0 [shape = 'u32[]', space=smem, size = 0x4, offset = 0x4, fixed_abs, tag = 'smem constant byte address 0x4 - core index']
  #allocation1 [shape = 'u32[144,128]{1,0:T(1,128)}', space=vmem, size = 0x12000, scoped, tag = 'internal scratch']
  %s0 = inlined_call_operand.vmem [shape: f32[2,18,16], index: 0, kind: input, shape index: {}]
  %s1 = inlined_call_operand.vmem [shape: f32[48,32], index: 1, kind: input, shape index: {}]
  %s2 = inlined_call_operand.vmem [shape: f32[32,128], index: 2, kind: input, shape index: {}]
  %s3 = inlined_call_operand.vmem [shape: f32[1,128], index: 3, kind: input, shape index: {}]
  %s4 = inlined_call_operand.hbm [shape: f32[2,128], index: 4, kind: output, shape index: {}]
  %s5 = sld [smem:[#allocation0]]
  $region26: #{sent_label_encoder.1} parent=0
    _
  %s7 = ssub.s32 1, %s5
  %s8 = scalar_select 0, %s7, %s5
  $region1: #{sent_label_encoder.1} parent=0
    #allocation2 [shape = 'u8[1024]{0}', space=vmem, size = 0x400, scoped, tag = 'output window, operand 0, single buffered']
    #allocation3 [shape = 's32[1]{0}', space=sflag, size = 0x4, scoped, tag = 'scoped memory for sent_label_encoder.1']
    %9 = vsyncpa [#allocation3], 0
    // Predicated region
    $region2: #{sent_label_encoder.1} parent=1 // pred_check
      _
    $region3: #{sent_label_encoder.1} parent=1 // pred_check_branch
      %11 = sbr.rel (0) target = $region5
    $region4: #{sent_label_encoder.1} parent=1 // pred_region
      _
    $region5: #{sent_label_encoder.1} parent=1 // pred_fallthru
      _
    // Predicated region
    $region6: #{sent_label_encoder.1} parent=1 // pred_check
      _
    $region7: #{sent_label_encoder.1} parent=1 // pred_check_branch
      %13 = sbr.rel (0) target = $region9
    $region8: #{sent_label_encoder.1} parent=1 // pred_region
      _
    $region9: #{sent_label_encoder.1} parent=1 // pred_fallthru
      _
    // Predicated region
    $region10: #{sent_label_encoder.1} parent=1 // pred_check
      _
    $region11: #{sent_label_encoder.1} parent=1 // pred_check_branch
      %15 = sbr.rel (0) target = $region13
    $region12: #{sent_label_encoder.1} parent=1 // pred_region
      _
    $region13: #{sent_label_encoder.1} parent=1 // pred_fallthru
      _
    // Predicated region
    $region14: #{sent_label_encoder.1} parent=1 // pred_check
      _
    $region15: #{sent_label_encoder.1} parent=1 // pred_check_branch
      %17 = sbr.rel (0) target = $region17
    $region16: #{sent_label_encoder.1} parent=1 // pred_region
      _
    $region17: #{sent_label_encoder.1} parent=1 // pred_fallthru
      _
    %v18 = vld [vmem:[%s0] sm:$0xff]
    %v19 = vld [vmem:[%s0 + $0x8] sm:$0xff]
    %v20 = vld [vmem:[%s0 + $0x18] sm:$0xff]
    %v21 = vld [vmem:[%s0 + $0x20] sm:$0xff]
    %v22 = vld [vmem:[%s0 + $0x1] sm:$0xff]
    %v23 = vld [vmem:[%s0 + $0x9] sm:$0xff]
    %v24 = vld [vmem:[%s0 + $0x19] sm:$0xff]
    %v25 = vld [vmem:[%s0 + $0x21] sm:$0xff]
    %v26 = vld [vmem:[%s0 + $0x2] sm:$0xff]
    %v27 = vld [vmem:[%s0 + $0xa] sm:$0xff]
    %v28 = vld [vmem:[%s0 + $0x1a] sm:$0xff]
    %v29 = vld [vmem:[%s0 + $0x22] sm:$0xff]
    %34 = vrot.lane.b32.xlu0 %v22, 16
    %v35 = vpop.permute.xlu0 %34
    %36 = vrot.lane.b32.xlu0 %v23, 16
    %v37 = vpop.permute.xlu0 %36
    %38 = vrot.lane.b32.xlu0 %v24, 16
    %v39 = vpop.permute.xlu0 %38
    %40 = vrot.lane.b32.xlu0 %v25, 16
    %v41 = vpop.permute.xlu0 %40
    %50 = vrot.lane.b32.xlu0 %v26, 32
    %v51 = vpop.permute.xlu0 %50
    %52 = vrot.lane.b32.xlu0 %v27, 32
    %v53 = vpop.permute.xlu0 %52
    %54 = vrot.lane.b32.xlu0 %v28, 32
    %v55 = vpop.permute.xlu0 %54
    %56 = vrot.lane.b32.xlu0 %v29, 32
    %v57 = vpop.permute.xlu0 %56
    %vm62 = vcmask 130048
    %v63 = vsel %vm62, %v18, %v35
    %v64 = vsel %vm62, %v19, %v37
    %v65 = vsel %vm62, %v20, %v39
    %v66 = vsel %vm62, %v21, %v41
    %vm67 = vcmask 261120
    %v68 = vsel %vm67, %v63, %v51
    %v69 = vsel %vm67, %v64, %v53
    %v70 = vsel %vm67, %v65, %v55
    %v71 = vsel %vm67, %v66, %v57
    %v72 = vld [vmem:[%s1] sm:$0xff]
    %v73 = vld [vmem:[%s1 + $0x8] sm:$0xff]
    %v74 = vld [vmem:[%s1 + $0x10] sm:$0xff]
    %v75 = vld [vmem:[%s1 + $0x18] sm:$0xff]
    %v76 = vld [vmem:[%s1 + $0x20] sm:$0xff]
    %v77 = vld [vmem:[%s1 + $0x28] sm:$0xff]
    %vm78 = vcmask 392192
    %v80 = vsel %vm78, %v68, 0
    %v83 = vsel %vm78, %v69, 0
    %v86 = vsel %vm78, %v70, 0
    %v89 = vsel %vm78, %v71, 0
    %91 = vmatprep.subr.mxu0 0.0
    %92 = vmatpush1.msra.mxu0 %v72
    %93 = vmatprep.subr.mxu0 0.0
    %94 = vmatpush1.msra.mxu0 %v73
    %95 = vmatprep.subr.mxu0 0.0
    %96 = vmatpush1.msra.mxu0 %v74
    %97 = vmatprep.subr.mxu0 0.0
    %98 = vmatpush1.msra.mxu0 %v75
    %99 = vmatprep.subr.mxu0 0.0
    %100 = vmatpush1.msra.mxu0 %v76
    %101 = vmatprep.subr.mxu0 0.0
    %102 = vmatpush1.msra.mxu0 %v77
    %103 = vmatprep.subr.mxu0 0.0
    %104 = vmatpush1.msra.mxu0 0.0
    %105 = vmatprep.subr.mxu0 0.0
    %106 = vmatpush1.msra.mxu0 0.0
    %107 = vmatprep.subr.mxu0 0.0
    %108 = vmatpush1.msra.mxu0 0.0
    %109 = vmatprep.subr.mxu0 0.0
    %110 = vmatpush1.msra.mxu0 0.0
    %111 = vmatprep.subr.mxu0 0.0
    %112 = vmatpush1.msra.mxu0 0.0
    %113 = vmatprep.subr.mxu0 0.0
    %114 = vmatpush1.msra.mxu0 0.0
    %115 = vmatprep.subr.mxu0 0.0
    %116 = vmatpush1.msra.mxu0 0.0
    %117 = vmatprep.subr.mxu0 0.0
    %118 = vmatpush1.msra.mxu0 0.0
    %119 = vmatprep.subr.mxu0 0.0
    %120 = vmatpush1.msra.mxu0 0.0
    %121 = vmatprep.subr.mxu0 0.0
    %122 = vmatpush1.msra.mxu0 0.0
    %123 = vmatprep.subr.mxu0 0.0
    %124 = vmatpush1.msra.mxu0 0.0
    %125 = vmatprep.subr.mxu0 0.0
    %126 = vmatpush1.msra.mxu0 0.0
    %127 = vmatprep.subr.mxu0 0.0
    %128 = vmatpush1.msra.mxu0 0.0
    %129 = vmatprep.subr.mxu0 0.0
    %130 = vmatpush1.msra.mxu0 0.0
    %131 = vmatprep.subr.mxu0 0.0
    %132 = vmatpush1.msra.mxu0 0.0
    %133 = vmatprep.subr.mxu0 0.0
    %134 = vmatpush1.msra.mxu0 0.0
    %135 = vmatprep.subr.mxu0 0.0
    %136 = vmatpush1.msra.mxu0 0.0
    %137 = vmatprep.subr.mxu0 0.0
    %138 = vmatpush1.msra.mxu0 0.0
    %139 = vmatprep.subr.mxu0 0.0
    %140 = vmatpush1.msra.mxu0 0.0
    %141 = vmatprep.subr.mxu0 0.0
    %142 = vmatpush1.msra.mxu0 0.0
    %143 = vmatprep.subr.mxu0 0.0
    %144 = vmatpush1.msra.mxu0 0.0
    %145 = vmatprep.subr.mxu0 0.0
    %146 = vmatpush1.msra.mxu0 0.0
    %147 = vmatprep.subr.mxu0 0.0
    %148 = vmatpush1.msra.mxu0 0.0
    %149 = vmatprep.subr.mxu0 0.0
    %150 = vmatpush1.msra.mxu0 0.0
    %151 = vmatprep.subr.mxu0 0.0
    %152 = vmatpush1.msra.mxu0 0.0
    %153 = vmatprep.subr.mxu0 0.0
    %154 = vmatpush1.msra.mxu0 0.0
    %155 = vmatprep.mubr.f32.mxu0 0.0
    %156 = vmatmul.mubr.f32.gmra.mrb[0].mxu0 %v80
    %v157 = vpop.f32.mrb[0].mxu0
    %v158 = vadd.f32 0.0, %v157
    %v159 = vpop.f32.mrb[0].mxu0
    %160 = vmatprep.mubr.f32.mxu0 0.0
    %161 = vmatmul.mubr.f32.gmra.mrb[0].mxu0 %v83
    %v162 = vpop.f32.mrb[0].mxu0
    %v163 = vadd.f32 0.0, %v162
    %v164 = vpop.f32.mrb[0].mxu0
    %165 = vmatprep.mubr.f32.mxu0 0.0
    %166 = vmatmul.mubr.f32.gmra.mrb[0].mxu0 %v86
    %v167 = vpop.f32.mrb[0].mxu0
    %v168 = vadd.f32 0.0, %v167
    %v169 = vpop.f32.mrb[0].mxu0
    %170 = vmatprep.mubr.f32.mxu0 0.0
    %171 = vmatmul.mubr.f32.gmra.mrb[0].mxu0 %v89
    %v172 = vpop.f32.mrb[0].mxu0
    %v173 = vadd.f32 0.0, %v172
    %v174 = vpop.f32.mrb[0].mxu0
    %175 = vdwg.mxu0
    %v176 = vsel %vm67, %v158, -inf
    %v177 = vsel %vm67, %v163, -inf
    %v178 = vmax.f32 %v176, %v177
    %v179 = vrot.slane %v178, 4
    %v180 = vmax.f32 %v178, %v179
    %v181 = vrot.slane %v180, 2
    %v182 = vmax.f32 %v180, %v181
    %v183 = vrot.slane %v182, 1
    %v184 = vmax.f32 %v182, %v183
    %v185 = vsel %vm67, %v168, -inf
    %v186 = vsel %vm67, %v173, -inf
    %v187 = vmax.f32 %v185, %v186
    %v188 = vrot.slane %v187, 4
    %v189 = vmax.f32 %v187, %v188
    %v190 = vrot.slane %v189, 2
    %v191 = vmax.f32 %v189, %v190
    %v192 = vrot.slane %v191, 1
    %v193 = vmax.f32 %v191, %v192
    %v194 = vld [vmem:[%s2] sm:$0xff]
    %v195 = vld [vmem:[%s2 + $0x8] sm:$0xff]
    %v196 = vld [vmem:[%s2 + $0x10] sm:$0xff]
    %v197 = vld [vmem:[%s2 + $0x18] sm:$0xff]
    %v198 = vld [vmem:[%s3] sm:$0x1]
    %v200 = vlaneseq
    %v201 = vshrl.u32 %v200, 7
    %v202 = vsub.s32 0, %v201
    %v203 = vrot.slane %v198, %v202
    %vm207 = vcmask 1041409
    %v208 = vsel %vm207, %v193, %v184
    %v209 = vsel %vm67, %v208, 0
    %211 = vmatprep.subr.mxu0 0.0
    %212 = vmatpush1.msra.mxu0 %v194
    %213 = vmatprep.subr.mxu0 0.0
    %214 = vmatpush1.msra.mxu0 %v195
    %215 = vmatprep.subr.mxu0 0.0
    %216 = vmatpush1.msra.mxu0 %v196
    %217 = vmatprep.subr.mxu0 0.0
    %218 = vmatpush1.msra.mxu0 %v197
    %219 = vmatprep.subr.mxu0 0.0
    %220 = vmatpush1.msra.mxu0 0.0
    %221 = vmatprep.subr.mxu0 0.0
    %222 = vmatpush1.msra.mxu0 0.0
    %223 = vmatprep.subr.mxu0 0.0
    %224 = vmatpush1.msra.mxu0 0.0
    %225 = vmatprep.subr.mxu0 0.0
    %226 = vmatpush1.msra.mxu0 0.0
    %227 = vmatprep.subr.mxu0 0.0
    %228 = vmatpush1.msra.mxu0 0.0
    %229 = vmatprep.subr.mxu0 0.0
    %230 = vmatpush1.msra.mxu0 0.0
    %231 = vmatprep.subr.mxu0 0.0
    %232 = vmatpush1.msra.mxu0 0.0
    %233 = vmatprep.subr.mxu0 0.0
    %234 = vmatpush1.msra.mxu0 0.0
    %235 = vmatprep.subr.mxu0 0.0
    %236 = vmatpush1.msra.mxu0 0.0
    %237 = vmatprep.subr.mxu0 0.0
    %238 = vmatpush1.msra.mxu0 0.0
    %239 = vmatprep.subr.mxu0 0.0
    %240 = vmatpush1.msra.mxu0 0.0
    %241 = vmatprep.subr.mxu0 0.0
    %242 = vmatpush1.msra.mxu0 0.0
    %243 = vmatprep.subr.mxu0 0.0
    %244 = vmatpush1.msra.mxu0 0.0
    %245 = vmatprep.subr.mxu0 0.0
    %246 = vmatpush1.msra.mxu0 0.0
    %247 = vmatprep.subr.mxu0 0.0
    %248 = vmatpush1.msra.mxu0 0.0
    %249 = vmatprep.subr.mxu0 0.0
    %250 = vmatpush1.msra.mxu0 0.0
    %251 = vmatprep.subr.mxu0 0.0
    %252 = vmatpush1.msra.mxu0 0.0
    %253 = vmatprep.subr.mxu0 0.0
    %254 = vmatpush1.msra.mxu0 0.0
    %255 = vmatprep.subr.mxu0 0.0
    %256 = vmatpush1.msra.mxu0 0.0
    %257 = vmatprep.subr.mxu0 0.0
    %258 = vmatpush1.msra.mxu0 0.0
    %259 = vmatprep.subr.mxu0 0.0
    %260 = vmatpush1.msra.mxu0 0.0
    %261 = vmatprep.subr.mxu0 0.0
    %262 = vmatpush1.msra.mxu0 0.0
    %263 = vmatprep.subr.mxu0 0.0
    %264 = vmatpush1.msra.mxu0 0.0
    %265 = vmatprep.subr.mxu0 0.0
    %266 = vmatpush1.msra.mxu0 0.0
    %267 = vmatprep.subr.mxu0 0.0
    %268 = vmatpush1.msra.mxu0 0.0
    %269 = vmatprep.subr.mxu0 0.0
    %270 = vmatpush1.msra.mxu0 0.0
    %271 = vmatprep.subr.mxu0 0.0
    %272 = vmatpush1.msra.mxu0 0.0
    %273 = vmatprep.subr.mxu0 0.0
    %274 = vmatpush1.msra.mxu0 0.0
    %275 = vmatprep.mubr.f32.mxu0 0.0
    %276 = vmatmul.mubr.f32.gmra.mrb[0].mxu0 %v209
    %v277 = vpop.f32.mrb[0].mxu0
    %v278 = vadd.f32 %v203, %v277
    %v279 = vpop.f32.mrb[0].mxu0
    %280 = vdwg.mxu0
    %v281 = vtanh.pop %v278
    %282 = vst [vmem:[#allocation2] sm:$0x3] %v281
    // Predicated region
    $region18: #{sent_label_encoder.1} parent=1 // pred_check
      _
    $region19: #{sent_label_encoder.1} parent=1 // pred_check_branch
      %284 = sbr.rel (0) target = $region21
    $region20: #{sent_label_encoder.1} parent=1 // pred_region
      %s286 = ssub.s32 32, 32
      %287 = vsyncadd [#allocation3], %s286
      %s289 = sshll.u32 [#allocation2], 4
      %s290 = int_to_ptr.vmem [resolvable:$true] %s289
      %292 = dma.vmem_to_hbm [thread:$0]  %s290, 32, %s4, [#allocation3]
    $region21: #{sent_label_encoder.1} parent=1 // pred_fallthru
      _
    // Predicated region
    $region22: #{sent_label_encoder.1} parent=1 // pred_check
      _
    $region23: #{sent_label_encoder.1} parent=1 // pred_check_branch
      %294 = sbr.rel (0) target = $region25
    $region24: #{sent_label_encoder.1} parent=1 // pred_region
      %295 = dma.done [#allocation3], 32
    $region25: #{sent_label_encoder.1} parent=1 // pred_fallthru
      _
    %296 = vsyncpa [#allocation3], 1

</llo_original>
